<compile_context>
chip_gen: v6e
topology: v6e:2x2x1
jax: 0.10.0
libtpu: 0.0.40
codegen_flags: <defaults>
</compile_context>

<pallas_src>
import functools

import jax
import jax.numpy as jnp
from jax import lax
from jax.experimental import pallas as pl
from jax.experimental.pallas import tpu as pltpu

_LANES = 128


def _round_up(x, m):
    return ((x + m - 1) // m) * m


def _default_num_splits():
    # v7x has 2 TensorCores sharing chip HBM: a size-2 "parallel" outer axis lets both
    # pull on this memory-bound stream. Single-TC chips (v5e/v6e) use 1, avoiding an
    # extra accumulator init / pipeline re-prime.
    try:
        kind = jax.devices()[0].device_kind.lower()
    except Exception:
        return 1
    return 2 if "v7" in kind else 1


def _bce_masked_kernel(x_ref, t_ref, m_ref, loss_ref, msum_ref, *,
                       rows, tr, ch, inner_steps):
    # Grid: (split [parallel], inner step [arbitrary / reduction]).
    s = pl.program_id(0)
    i = pl.program_id(1)

    @pl.when(i == 0)
    def _():
        loss_ref[...] = jnp.zeros_like(loss_ref)
        msum_ref[...] = jnp.zeros_like(msum_ref)

    # Row offset of this block in the flattened (rows, 128) view. Computed from the
    # *unclamped* block index so the tail mask also zeroes fully-OOB blocks whose
    # index_map index was clamped to the last real block.
    row_start = (s * inner_steps + i) * tr

    # Hoisted iota (don't re-broadcast per loop iteration).
    row_iota = lax.broadcasted_iota(jnp.int32, (ch, _LANES), 0)

    def body(c, carry):
        r0 = pl.multiple_of(c * ch, ch)
        x = x_ref[pl.ds(r0, ch), :].astype(jnp.float32)
        t = t_ref[pl.ds(r0, ch), :].astype(jnp.float32)
        m = m_ref[pl.ds(r0, ch), :].astype(jnp.float32)

        # Ragged-tail mask: rows >= `rows` come from undefined / clamped OOB block
        # contents and must contribute exactly 0 to both sums.
        valid = (row_start + r0 + row_iota) < rows

        m = jnp.where(valid, m, 0.0)
        xm = jnp.where(valid, x * m, 0.0)
        tm = jnp.where(valid, t * m, 0.0)

        # Faithful two-log BCE; F.binary_cross_entropy clamps log terms at -100.
        log_x = jnp.maximum(jnp.log(xm), jnp.float32(-100.0))
        log_1mx = jnp.maximum(jnp.log(1.0 - xm), jnp.float32(-100.0))
        elem_loss = -(tm * log_x + (1.0 - tm) * log_1mx)

        # Vreg-wise partial sums: (ch,128) -> (ch/8, 8, 128) -> VPU adds into the
        # resident (8,128) output accumulator blocks (no per-step XLU/scalar reduce).
        loss_ref[...] += elem_loss.reshape(ch // 8, 8, _LANES).sum(axis=0)
        msum_ref[...] += m.reshape(ch // 8, 8, _LANES).sum(axis=0)
        return carry

    lax.fori_loop(0, tr // ch, body, 0)
    # Output blocks are written back automatically when the split index changes.


def bce_masked_loss(inp, target, mask, *, max_tile_rows=8192, num_splits=None):
    """loss = F.binary_cross_entropy(inp * mask, target * mask, 'sum') / mask.sum()

    target / mask (and inp) may be passed in any dtype (bool / int8 / bf16 / f32);
    the kernel upcasts internally, so producing them narrow *upstream* cuts HBM
    traffic. No wrapper-side casts or full-array padding are performed.
    """
    if num_splits is None:
        num_splits = _default_num_splits()

    total = inp.size
    x = inp.reshape(-1)
    t = target.reshape(-1)
    m = mask.reshape(-1)

    # Only a tiny ragged tail (< 128 elements) is ever padded; for typical shapes
    # total % 128 == 0 and no wrapper-side copy happens at all. Zero padding
    # contributes exactly 0 to both the loss sum and the mask sum.
    rem = total % _LANES
    if rem:
        pad = _LANES - rem
        x = jnp.pad(x, (0, pad))
        t = jnp.pad(t, (0, pad))
        m = jnp.pad(m, (0, pad))
    rows = x.size // _LANES

    # Minimum second-to-last-dim granularity across input dtypes
    # (f32: 8, bf16: 16, int8/bool: 32) -> block rows satisfy min-tile rules.
    itemsizes = [jnp.dtype(a.dtype).itemsize for a in (x, t, m)]
    min_sub = max([8] + [32 // isz for isz in itemsizes])
    if rows < min_sub:  # truly tiny input: pad a few rows (negligible copy)
        extra = (min_sub - rows) * _LANES
        x = jnp.pad(x, (0, extra))
        t = jnp.pad(t, (0, extra))
        m = jnp.pad(m, (0, extra))
        rows = min_sub

    # Tile rows: large for DMA amortization, strip-mined inside the kernel.
    tr = min(_round_up(max_tile_rows, min_sub), _round_up(rows, min_sub))
    if tr > 512:
        tr = (tr // 512) * 512  # multiple of the 512-row compute chunk
        ch = 512
    else:
        ch = tr

    # Free (layout-compatible) reshapes — no HBM traffic.
    x2 = x.reshape(rows, _LANES)
    t2 = t.reshape(rows, _LANES)
    m2 = m.reshape(rows, _LANES)

    nblocks = pl.cdiv(rows, tr)
    inner_steps = pl.cdiv(nblocks, num_splits)

    def in_map(s, i):
        b = s * inner_steps + i
        # Clamp: any fully out-of-range trailing block of the split decomposition
        # re-reads the last real block; the in-kernel tail mask zeroes it.
        return (jnp.minimum(b, nblocks - 1), 0)

    def out_map(s, i):
        return (s, 0)

    kernel = functools.partial(_bce_masked_kernel, rows=rows, tr=tr, ch=ch,
                               inner_steps=inner_steps)

    bytes_in = sum(a.size * jnp.dtype(a.dtype).itemsize for a in (x2, t2, m2))
    bytes_out = 2 * num_splits * 8 * _LANES * 4

    loss_part, msum_part = pl.pallas_call(
        kernel,
        out_shape=(
            jax.ShapeDtypeStruct((num_splits * 8, _LANES), jnp.float32),
            jax.ShapeDtypeStruct((num_splits * 8, _LANES), jnp.float32),
        ),
        grid_spec=pltpu.PrefetchScalarGridSpec(
            num_scalar_prefetch=0,
            grid=(num_splits, inner_steps),
            in_specs=[
                pl.BlockSpec((tr, _LANES), in_map),
                pl.BlockSpec((tr, _LANES), in_map),
                pl.BlockSpec((tr, _LANES), in_map),
            ],
            out_specs=[
                pl.BlockSpec((8, _LANES), out_map),
                pl.BlockSpec((8, _LANES), out_map),
            ],
        ),
        compiler_params=pltpu.CompilerParams(
            dimension_semantics=("parallel", "arbitrary"),
            # 3 f32 inputs x 2 buffers x (8192*128*4 B) = 24 MiB, plus bounded
            # compute temporaries; safe on every generation (v7x: 64 MiB VMEM/TC).
            vmem_limit_bytes=48 * 1024 * 1024,
        ),
        cost_estimate=pl.CostEstimate(
            flops=14 * total,
            transcendentals=2 * total,
            bytes_accessed=bytes_in + bytes_out,
        ),
    )(x2, t2, m2)

    # Final cross-lane/sublane reduce + divide is tiny; do it in plain JAX.
    # (Matches PyTorch semantics exactly: mask.sum() == 0 yields NaN/Inf, unguarded.)
    return jnp.sum(loss_part) / jnp.sum(msum_part)


def _reference(inp, target, mask):
    xm = inp * mask
    tm = target * mask
    log_x = jnp.maximum(jnp.log(xm), -100.0)
    log_1mx = jnp.maximum(jnp.log(1.0 - xm), -100.0)
    loss = -(tm * log_x + (1.0 - tm) * log_1mx)
    return jnp.sum(loss) / jnp.sum(mask)


if __name__ == "__main__":
    key = jax.random.PRNGKey(0)
    k1, k2, k3 = jax.random.split(key, 3)

    N, C, H, W = 2, 4, 16, 16  # NCHW, 2048 elements total
    # binary_cross_entropy expects probabilities in [0, 1]
    inp = jax.random.uniform(k1, (N, C, H, W), dtype=jnp.float32,
                             minval=1e-4, maxval=1.0 - 1e-4)
    target = (jax.random.uniform(k2, (N, C, H, W)) > 0.5).astype(jnp.float32)
    mask = (jax.random.uniform(k3, (N, C, H, W)) > 0.3).astype(jnp.float32)

    out = bce_masked_loss(inp, target, mask)
    out = jax.block_until_ready(out)

    ref = _reference(inp, target, mask)
    assert jnp.allclose(out, ref, rtol=1e-5, atol=1e-5), (out, ref)

    print("KERNEL_OK")
</pallas_src>

<mosaic_0001>
module attributes {stable_mosaic.version = 11 : i64} {
  func.func @_bce_masked_kernel(%arg0: i32, %arg1: i32, %arg2: memref<16x128xf32, #tpu.memory_space<vmem>>, %arg3: memref<16x128xf32, #tpu.memory_space<vmem>>, %arg4: memref<16x128xf32, #tpu.memory_space<vmem>>, %arg5: memref<8x128xf32, #tpu.memory_space<vmem>>, %arg6: memref<8x128xf32, #tpu.memory_space<vmem>>) attributes {dimension_semantics = [#tpu.dimension_semantics<parallel>, #tpu.dimension_semantics<arbitrary>], iteration_bounds = array<i64: 1, 1>, scalar_prefetch = 0 : i64, scratch_operands = 0 : i64, tpu.core_type = #tpu.core_type<tc>, window_params = [{transform_indices = @transform_0, window_bounds = array<i64: 16, 128>}, {transform_indices = @transform_1, window_bounds = array<i64: 16, 128>}, {transform_indices = @transform_2, window_bounds = array<i64: 16, 128>}, {transform_indices = @transform_3, window_bounds = array<i64: 8, 128>}, {transform_indices = @transform_4, window_bounds = array<i64: 8, 128>}]} {
    %c0_i32 = arith.constant 0 : i32
    %0 = arith.cmpi eq, %arg1, %c0_i32 : i32
    %1 = arith.extui %0 : i1 to i32
    %c0_i32_0 = arith.constant 0 : i32
    %2 = arith.cmpi ne, %1, %c0_i32_0 : i32
    scf.if %2 {
      %cst_24 = arith.constant 0.000000e+00 : f32
      %53 = vector.broadcast %cst_24 : f32 to vector<8x128xf32>
      %c0_25 = arith.constant 0 : index
      %c0_26 = arith.constant 0 : index
      %54 = vector.load %arg5[%c0_25, %c0_26] : memref<8x128xf32, #tpu.memory_space<vmem>>, vector<8x128xf32>
      tpu.vector_store %arg5[%c0_25, %c0_26], %53 {strides = array<i32>} : memref<8x128xf32, #tpu.memory_space<vmem>>, vector<8x128xf32>,
      %cst_27 = arith.constant 0.000000e+00 : f32
      %55 = vector.broadcast %cst_27 : f32 to vector<8x128xf32>
      %c0_28 = arith.constant 0 : index
      %c0_29 = arith.constant 0 : index
      %56 = vector.load %arg6[%c0_28, %c0_29] : memref<8x128xf32, #tpu.memory_space<vmem>>, vector<8x128xf32>
      tpu.vector_store %arg6[%c0_28, %c0_29], %55 {strides = array<i32>} : memref<8x128xf32, #tpu.memory_space<vmem>>, vector<8x128xf32>,
    } else {
    }
    %c1_i32 = arith.constant 1 : i32
    %3 = arith.muli %arg0, %c1_i32 : i32
    %4 = arith.addi %3, %arg1 : i32
    %c16_i32 = arith.constant 16 : i32
    %5 = arith.muli %4, %c16_i32 : i32
    %6 = tpu.iota {dimensions = array<i32: 0>} : vector<16x128xi32>
    %c0_i32_1 = arith.constant 0 : i32
    %c16_i32_2 = arith.constant 16 : i32
    %7 = arith.muli %c0_i32_1, %c16_i32_2 : i32
    %8 = tpu.assume_multiple %7, 16 : i32
    %9 = arith.index_cast %8 : i32 to index
    %c0 = arith.constant 0 : index
    %10 = vector.load %arg2[%9, %c0] : memref<16x128xf32, #tpu.memory_space<vmem>>, vector<16x128xf32>
    %11 = arith.index_cast %8 : i32 to index
    %c0_3 = arith.constant 0 : index
    %12 = vector.load %arg3[%11, %c0_3] : memref<16x128xf32, #tpu.memory_space<vmem>>, vector<16x128xf32>
    %13 = arith.index_cast %8 : i32 to index
    %c0_4 = arith.constant 0 : index
    %14 = vector.load %arg4[%13, %c0_4] : memref<16x128xf32, #tpu.memory_space<vmem>>, vector<16x128xf32>
    %15 = arith.addi %5, %8 : i32
    %16 = vector.broadcast %15 : i32 to vector<16x128xi32>
    %17 = arith.addi %16, %6 : vector<16x128xi32>
    %c16_i32_5 = arith.constant 16 : i32
    %18 = vector.broadcast %c16_i32_5 : i32 to vector<16x128xi32>
    %19 = arith.cmpi slt, %17, %18 : vector<16x128xi32>
    %cst = arith.constant 0.000000e+00 : f32
    %20 = vector.broadcast %cst : f32 to vector<16x128xf32>
    %21 = arith.select %19, %14, %20 : vector<16x128xi1>, vector<16x128xf32>
    %22 = arith.mulf %10, %21 : vector<16x128xf32>
    %cst_6 = arith.constant 0.000000e+00 : f32
    %23 = vector.broadcast %cst_6 : f32 to vector<16x128xf32>
    %24 = arith.select %19, %22, %23 : vector<16x128xi1>, vector<16x128xf32>
    %25 = arith.mulf %12, %21 : vector<16x128xf32>
    %cst_7 = arith.constant 0.000000e+00 : f32
    %26 = vector.broadcast %cst_7 : f32 to vector<16x128xf32>
    %27 = arith.select %19, %25, %26 : vector<16x128xi1>, vector<16x128xf32>
    %28 = math.log %24 : vector<16x128xf32>
    %cst_8 = arith.constant -1.000000e+02 : f32
    %29 = vector.broadcast %cst_8 : f32 to vector<16x128xf32>
    %30 = arith.maximumf %28, %29 : vector<16x128xf32>
    %cst_9 = arith.constant 1.000000e+00 : f32
    %31 = vector.broadcast %cst_9 : f32 to vector<16x128xf32>
    %32 = arith.subf %31, %24 : vector<16x128xf32>
    %33 = math.log %32 : vector<16x128xf32>
    %cst_10 = arith.constant -1.000000e+02 : f32
    %34 = vector.broadcast %cst_10 : f32 to vector<16x128xf32>
    %35 = arith.maximumf %33, %34 : vector<16x128xf32>
    %36 = arith.mulf %27, %30 : vector<16x128xf32>
    %cst_11 = arith.constant 1.000000e+00 : f32
    %37 = vector.broadcast %cst_11 : f32 to vector<16x128xf32>
    %38 = arith.subf %37, %27 : vector<16x128xf32>
    %39 = arith.mulf %38, %35 : vector<16x128xf32>
    %40 = arith.addf %36, %39 : vector<16x128xf32>
    %cst_12 = arith.constant 0.000000e+00 : f32
    %41 = vector.broadcast %cst_12 : f32 to vector<16x128xf32>
    %42 = arith.subf %41, %40 : vector<16x128xf32>
    %c0_13 = arith.constant 0 : index
    %c0_14 = arith.constant 0 : index
    %43 = vector.load %arg5[%c0_13, %c0_14] : memref<8x128xf32, #tpu.memory_space<vmem>>, vector<8x128xf32>
    %44 = vector.shape_cast %42 : vector<16x128xf32> to vector<2x8x128xf32>
    %cst_15 = arith.constant dense<0.000000e+00> : vector<8x128xf32>
    %45 = vector.multi_reduction <add>, %44, %cst_15 [0] : vector<2x8x128xf32> to vector<8x128xf32>
    %46 = arith.addf %43, %45 : vector<8x128xf32>
    %c0_16 = arith.constant 0 : index
    %c0_17 = arith.constant 0 : index
    %47 = vector.load %arg5[%c0_16, %c0_17] : memref<8x128xf32, #tpu.memory_space<vmem>>, vector<8x128xf32>
    tpu.vector_store %arg5[%c0_16, %c0_17], %46 {strides = array<i32>} : memref<8x128xf32, #tpu.memory_space<vmem>>, vector<8x128xf32>,
    %c0_18 = arith.constant 0 : index
    %c0_19 = arith.constant 0 : index
    %48 = vector.load %arg6[%c0_18, %c0_19] : memref<8x128xf32, #tpu.memory_space<vmem>>, vector<8x128xf32>
    %49 = vector.shape_cast %21 : vector<16x128xf32> to vector<2x8x128xf32>
    %cst_20 = arith.constant dense<0.000000e+00> : vector<8x128xf32>
    %50 = vector.multi_reduction <add>, %49, %cst_20 [0] : vector<2x8x128xf32> to vector<8x128xf32>
    %51 = arith.addf %48, %50 : vector<8x128xf32>
    %c0_21 = arith.constant 0 : index
    %c0_22 = arith.constant 0 : index
    %52 = vector.load %arg6[%c0_21, %c0_22] : memref<8x128xf32, #tpu.memory_space<vmem>>, vector<8x128xf32>
    tpu.vector_store %arg6[%c0_21, %c0_22], %51 {strides = array<i32>} : memref<8x128xf32, #tpu.memory_space<vmem>>, vector<8x128xf32>,
    %c1_i32_23 = arith.constant 1 : i32
    return
  }
  func.func @transform_0(%arg0: i32, %arg1: i32) -> (i32, i32) {
    %c1_i32 = arith.constant 1 : i32
    %0 = arith.muli %arg0, %c1_i32 : i32
    %1 = arith.addi %0, %arg1 : i32
    %c0_i32 = arith.constant 0 : i32
    %2 = arith.minsi %1, %c0_i32 : i32
    %c0_i32_0 = arith.constant 0 : i32
    %c0_i32_1 = arith.constant 0 : i32
    return %2, %c0_i32_0 : i32, i32
  }
  func.func @transform_1(%arg0: i32, %arg1: i32) -> (i32, i32) {
    %c1_i32 = arith.constant 1 : i32
    %0 = arith.muli %arg0, %c1_i32 : i32
    %1 = arith.addi %0, %arg1 : i32
    %c0_i32 = arith.constant 0 : i32
    %2 = arith.minsi %1, %c0_i32 : i32
    %c0_i32_0 = arith.constant 0 : i32
    %c0_i32_1 = arith.constant 0 : i32
    return %2, %c0_i32_0 : i32, i32
  }
  func.func @transform_2(%arg0: i32, %arg1: i32) -> (i32, i32) {
    %c1_i32 = arith.constant 1 : i32
    %0 = arith.muli %arg0, %c1_i32 : i32
    %1 = arith.addi %0, %arg1 : i32
    %c0_i32 = arith.constant 0 : i32
    %2 = arith.minsi %1, %c0_i32 : i32
    %c0_i32_0 = arith.constant 0 : i32
    %c0_i32_1 = arith.constant 0 : i32
    return %2, %c0_i32_0 : i32, i32
  }
  func.func @transform_3(%arg0: i32, %arg1: i32) -> (i32, i32) {
    %c0_i32 = arith.constant 0 : i32
    %c0_i32_0 = arith.constant 0 : i32
    return %arg0, %c0_i32 : i32, i32
  }
  func.func @transform_4(%arg0: i32, %arg1: i32) -> (i32, i32) {
    %c0_i32 = arith.constant 0 : i32
    %c0_i32_0 = arith.constant 0 : i32
    return %arg0, %c0_i32 : i32, i32
  }
}

</mosaic_0001>

<llo_original>
// kernel: tpu_custom_call.1
$region0: #{tpu_custom_call.1}
  #allocation0 [shape = 'u32[]', space=smem, size = 0x4, offset = 0x4, fixed_abs, tag = 'smem constant byte address 0x4 - core index']
  #allocation1 [shape = 'u32[144,128]{1,0:T(1,128)}', space=vmem, size = 0x12000, scoped, tag = 'internal scratch']
  %s0 = inlined_call_operand.hbm [shape: f32[16,128], index: 0, kind: input, shape index: {}]
  %s1 = inlined_call_operand.hbm [shape: f32[16,128], index: 1, kind: input, shape index: {}]
  %s2 = inlined_call_operand.hbm [shape: f32[16,128], index: 2, kind: input, shape index: {}]
  %s3 = inlined_call_operand.hbm [shape: f32[8,128], index: 3, kind: output, shape index: {0}]
  %s4 = inlined_call_operand.hbm [shape: f32[8,128], index: 4, kind: output, shape index: {1}]
  %5 = xla_tuple %s3, %s4
  %s6 = sld [smem:[#allocation0]]
  $region46: #{tpu_custom_call.1} parent=0
    _
  %s8 = ssub.s32 1, %s6
  %s9 = scalar_select 0, %s8, %s6
  $region1: #{tpu_custom_call.1} parent=0
    #allocation2 [shape = 'u8[8192]{0}', space=vmem, size = 0x2000, scoped, tag = 'input window, operand 0, single buffered']
    #allocation3 [shape = 's32[1]{0}', space=sflag, size = 0x4, scoped, tag = 'scoped memory for tpu_custom_call.1']
    #allocation4 [shape = 's32[1]{0}', space=sflag, size = 0x4, scoped, tag = 'scoped memory for tpu_custom_call.1']
    #allocation5 [shape = 'u8[8192]{0}', space=vmem, size = 0x2000, scoped, tag = 'input window, operand 1, single buffered']
    #allocation6 [shape = 's32[1]{0}', space=sflag, size = 0x4, scoped, tag = 'scoped memory for tpu_custom_call.1']
    #allocation7 [shape = 'u8[8192]{0}', space=vmem, size = 0x2000, scoped, tag = 'input window, operand 2, single buffered']
    #allocation8 [shape = 'u8[4096]{0}', space=vmem, size = 0x1000, scoped, tag = 'output window, operand 0, single buffered']
    #allocation9 [shape = 'u8[4096]{0}', space=vmem, size = 0x1000, scoped, tag = 'output window, operand 1, single buffered']
    #allocation10 [shape = 's32[1]{0}', space=sflag, size = 0x4, scoped, tag = 'scoped memory for tpu_custom_call.1']
    %10 = vsyncpa [#allocation3], 0
    %11 = vsyncpa [#allocation6], 0
    %12 = vsyncpa [#allocation4], 0
    %13 = vsyncpa [#allocation10], 0
    // Predicated region
    $region2: #{tpu_custom_call.1} parent=1 // pred_check
      _
    $region3: #{tpu_custom_call.1} parent=1 // pred_check_branch
      %15 = sbr.rel (0) target = $region5
    $region4: #{tpu_custom_call.1} parent=1 // pred_region
      %s16 = sadd.s32 0, 0
      %p17 = scmp.lt.s32.totalorder %s16, 0
      %s18 = scalar_select %p17, %s16, 0
      %s19 = smul.u32 2, %s18
      %s21 = ssub.s32 256, 256
      %22 = vsyncadd [#allocation3], %s21
      %s23 = smul.addr %s19, 128
      %s24 = scalar_lea.hbm %s0, %s23
      %s25 = sshll.u32 [#allocation2], 4
      %s26 = int_to_ptr.vmem [resolvable:$true] %s25
      %31 = dma.hbm_to_vmem [thread:$0]  %s24, 256, %s26, [#allocation3], 128, 128, 8
    $region5: #{tpu_custom_call.1} parent=1 // pred_fallthru
      _
    // Predicated region
    $region6: #{tpu_custom_call.1} parent=1 // pred_check
      _
    $region7: #{tpu_custom_call.1} parent=1 // pred_check_branch
      %33 = sbr.rel (0) target = $region9
    $region8: #{tpu_custom_call.1} parent=1 // pred_region
      %s34 = sadd.s32 0, 0
      %p35 = scmp.lt.s32.totalorder %s34, 0
      %s36 = scalar_select %p35, %s34, 0
      %s37 = smul.u32 2, %s36
      %s39 = ssub.s32 256, 256
      %40 = vsyncadd [#allocation6], %s39
      %s41 = smul.addr %s37, 128
      %s42 = scalar_lea.hbm %s1, %s41
      %s43 = sshll.u32 [#allocation5], 4
      %s44 = int_to_ptr.vmem [resolvable:$true] %s43
      %49 = dma.hbm_to_vmem [thread:$0]  %s42, 256, %s44, [#allocation6], 128, 128, 8
    $region9: #{tpu_custom_call.1} parent=1 // pred_fallthru
      _
    // Predicated region
    $region10: #{tpu_custom_call.1} parent=1 // pred_check
      _
    $region11: #{tpu_custom_call.1} parent=1 // pred_check_branch
      %51 = sbr.rel (0) target = $region13
    $region12: #{tpu_custom_call.1} parent=1 // pred_region
      %s52 = sadd.s32 0, 0
      %p53 = scmp.lt.s32.totalorder %s52, 0
      %s54 = scalar_select %p53, %s52, 0
      %s55 = smul.u32 2, %s54
      %s57 = ssub.s32 256, 256
      %58 = vsyncadd [#allocation6], %s57
      %s59 = smul.addr %s55, 128
      %s60 = scalar_lea.hbm %s2, %s59
      %s61 = sshll.u32 [#allocation7], 4
      %s62 = int_to_ptr.vmem [resolvable:$true] %s61
      %67 = dma.hbm_to_vmem [thread:$0]  %s60, 256, %s62, [#allocation6], 128, 128, 8
    $region13: #{tpu_custom_call.1} parent=1 // pred_fallthru
      _
    // Predicated region
    $region14: #{tpu_custom_call.1} parent=1 // pred_check
      _
    $region15: #{tpu_custom_call.1} parent=1 // pred_check_branch
      %69 = sbr.rel (0) target = $region17
    $region16: #{tpu_custom_call.1} parent=1 // pred_region
      %70 = dma.done [#allocation3], 256
    $region17: #{tpu_custom_call.1} parent=1 // pred_fallthru
      _
    // Predicated region
    $region18: #{tpu_custom_call.1} parent=1 // pred_check
      _
    $region19: #{tpu_custom_call.1} parent=1 // pred_check_branch
      %72 = sbr.rel (0) target = $region21
    $region20: #{tpu_custom_call.1} parent=1 // pred_region
      %73 = dma.done [#allocation6], 256
    $region21: #{tpu_custom_call.1} parent=1 // pred_fallthru
      _
    // Predicated region
    $region22: #{tpu_custom_call.1} parent=1 // pred_check
      _
    $region23: #{tpu_custom_call.1} parent=1 // pred_check_branch
      %75 = sbr.rel (0) target = $region25
    $region24: #{tpu_custom_call.1} parent=1 // pred_region
      %76 = dma.done [#allocation6], 256
    $region25: #{tpu_custom_call.1} parent=1 // pred_fallthru
      _
    %s77 = sadd.s32 0, 0
    %p78 = scmp.lt.s32.totalorder %s77, 0
    %s79 = scalar_select %p78, %s77, 0
    %s80 = smul.u32 2, %s79
    %s81 = sadd.s32 0, 0
    %p82 = scmp.lt.s32.totalorder %s81, 0
    %s83 = scalar_select %p82, %s81, 0
    %s84 = smul.u32 2, %s83
    %s85 = sadd.s32 0, 0
    %p86 = scmp.lt.s32.totalorder %s85, 0
    %s87 = scalar_select %p86, %s85, 0
    %s88 = smul.u32 2, %s87
    %p89 = scmp.eq.s32.totalorder 0, 0
    // Predicated region
    $region26: #{tpu_custom_call.1} parent=1 // pred_check
      %p90 = pneg %p89
    $region27: #{tpu_custom_call.1} parent=1 // pred_check_branch
      %92 = sbr.rel (%p90) target = $region29
    $region28: #{tpu_custom_call.1} parent=1 // pred_region
      %93 = vst [vmem:[#allocation8] sm:$0xff] 0.0
      %94 = vst [vmem:[#allocation9] sm:$0xff] 0.0
    $region29: #{tpu_custom_call.1} parent=1 // pred_fallthru
      _
    %s95 = sadd.s32 0, 0
    %s96 = smul.u32 %s95, 16
    %v97 = vlaneseq
    %v98 = vshrl.u32 %v97, 7
    %v99 = vadd.s32 %v98, 8
    %v100 = vld [vmem:[#allocation2] sm:$0xff]
    %v101 = vld [vmem:[#allocation2 + $0x8] sm:$0xff]
    %v102 = vld [vmem:[#allocation5] sm:$0xff]
    %v103 = vld [vmem:[#allocation5 + $0x8] sm:$0xff]
    %v104 = vld [vmem:[#allocation7] sm:$0xff]
    %v105 = vld [vmem:[#allocation7 + $0x8] sm:$0xff]
    %s106 = sadd.s32 %s96, 0
    %v107 = vstv %s106
    %v108 = vadd.s32 %v107, %v98
    %v109 = vadd.s32 %v107, %v99
    %vm110 = vcmp.lt.s32.totalorder %v108, 16
    %vm111 = vcmp.lt.s32.totalorder %v109, 16
    %v112 = vsel %vm110, %v104, 0.0
    %v113 = vsel %vm111, %v105, 0.0
    %v114 = vmul.f32 %v100, %v112
    %v115 = vmul.f32 %v101, %v113
    %v116 = vsel %vm110, %v114, 0.0
    %v117 = vsel %vm111, %v115, 0.0
    %v118 = vmul.f32 %v102, %v112
    %v119 = vmul.f32 %v103, %v113
    %v120 = vsel %vm110, %v118, 0.0
    %v121 = vsel %vm111, %v119, 0.0
    %v122 = vlog2.pop %v116
    %v123 = vmul.f32 %v122, 0.6931472
    %v124 = vlog2.pop %v117
    %v125 = vmul.f32 %v124, 0.6931472
    %v126 = vmax.f32 %v123, -100.0
    %v127 = vmax.f32 %v125, -100.0
    %v128 = vsub.f32 1.0, %v116
    %v129 = vsub.f32 1.0, %v117
    %v130 = vlog2.pop %v128
    %v131 = vmul.f32 %v130, 0.6931472
    %v132 = vlog2.pop %v129
    %v133 = vmul.f32 %v132, 0.6931472
    %v134 = vmax.f32 %v131, -100.0
    %v135 = vmax.f32 %v133, -100.0
    %v136 = vmul.f32 %v120, %v126
    %v137 = vmul.f32 %v121, %v127
    %v138 = vsub.f32 1.0, %v120
    %v139 = vsub.f32 1.0, %v121
    %v140 = vmul.f32 %v138, %v134
    %v141 = vmul.f32 %v139, %v135
    %v142 = vadd.f32 %v136, %v140
    %v143 = vadd.f32 %v137, %v141
    %v144 = vsub.f32 0.0, %v142
    %v145 = vsub.f32 0.0, %v143
    %v146 = vld [vmem:[#allocation8] sm:$0xff]
    %v147 = vadd.f32 %v144, %v145
    %v148 = vadd.f32 %v146, %v147
    %149 = vst [vmem:[#allocation8] sm:$0xff] %v148
    %v150 = vld [vmem:[#allocation9] sm:$0xff]
    %v151 = vadd.f32 %v112, %v113
    %v152 = vadd.f32 %v150, %v151
    %153 = vst [vmem:[#allocation9] sm:$0xff] %v152
    // Predicated region
    $region30: #{tpu_custom_call.1} parent=1 // pred_check
      _
    $region31: #{tpu_custom_call.1} parent=1 // pred_check_branch
      %155 = sbr.rel (0) target = $region33
    $region32: #{tpu_custom_call.1} parent=1 // pred_region
      %s157 = ssub.s32 128, 128
      %158 = vsyncadd [#allocation4], %s157
      %s160 = sshll.u32 [#allocation8], 4
      %s161 = int_to_ptr.vmem [resolvable:$true] %s160
      %163 = dma.vmem_to_hbm [thread:$0]  %s161, 128, %s3, [#allocation4]
    $region33: #{tpu_custom_call.1} parent=1 // pred_fallthru
      _
    // Predicated region
    $region34: #{tpu_custom_call.1} parent=1 // pred_check
      _
    $region35: #{tpu_custom_call.1} parent=1 // pred_check_branch
      %165 = sbr.rel (0) target = $region37
    $region36: #{tpu_custom_call.1} parent=1 // pred_region
      %s167 = ssub.s32 128, 128
      %168 = vsyncadd [#allocation10], %s167
      %s170 = sshll.u32 [#allocation9], 4
      %s171 = int_to_ptr.vmem [resolvable:$true] %s170
      %173 = dma.vmem_to_hbm [thread:$0]  %s171, 128, %s4, [#allocation10]
    $region37: #{tpu_custom_call.1} parent=1 // pred_fallthru
      _
    // Predicated region
    $region38: #{tpu_custom_call.1} parent=1 // pred_check
      _
    $region39: #{tpu_custom_call.1} parent=1 // pred_check_branch
      %175 = sbr.rel (0) target = $region41
    $region40: #{tpu_custom_call.1} parent=1 // pred_region
      %176 = dma.done [#allocation4], 128
    $region41: #{tpu_custom_call.1} parent=1 // pred_fallthru
      _
    // Predicated region
    $region42: #{tpu_custom_call.1} parent=1 // pred_check
      _
    $region43: #{tpu_custom_call.1} parent=1 // pred_check_branch
      %178 = sbr.rel (0) target = $region45
    $region44: #{tpu_custom_call.1} parent=1 // pred_region
      %179 = dma.done [#allocation10], 128
    $region45: #{tpu_custom_call.1} parent=1 // pred_fallthru
      _
    %180 = vsyncpa [#allocation3], 1
    %181 = vsyncpa [#allocation6], 1
    %182 = vsyncpa [#allocation4], 1
    %183 = vsyncpa [#allocation10], 1

</llo_original>
